<compile_context>
chip_gen: v7x
topology: tpu7x:2x2x1
jax: 0.10.0
libtpu: 0.0.40
codegen_flags: <defaults>
</compile_context>

<pallas_src>
import functools

import jax
import jax.numpy as jnp
from jax.experimental import pallas as pl
from jax.experimental.pallas import tpu as pltpu


def _round_up(n, m):
    return ((n + m - 1) // m) * m


def _pad_to(a, shape):
    pads = [(0, t - s) for s, t in zip(a.shape, shape)]
    if all(p == (0, 0) for p in pads):
        return a
    return jnp.pad(a, pads)


def _vmem_capacity_bytes():
    """Per-core VMEM capacity from the device; conservative 64 MiB fallback.

    The fallback can only make sizing MORE conservative (never OOM), so the
    broad except here is safe -- unlike a fallback around pallas_call itself.
    """
    try:
        cap = getattr(pltpu.get_tpu_info(), "vmem_capacity_bytes", None)
        if cap:
            return int(cap)
    except Exception:
        pass
    return 64 * 1024 * 1024


def _mlp_kernel(x_ref, w_enc_ref, b_enc_ref, w_hid_ref, b_hid_ref,
                w_dec_ref, b_dec_ref, o_ref, h_ref, *, n_layers, residual,
                compute_dtype):
    """One (batch_tile, layer) grid step.

    Grid axis 0 = batch tile ("parallel"), axis 1 = hidden layer
    ("arbitrary", innermost).  h_ref is a persistent VMEM scratch carrying the
    hidden activation across the layer axis.
    """
    l = pl.program_id(1)
    last = pl.num_programs(1) - 1

    is_f32 = jnp.dtype(compute_dtype) == jnp.dtype(jnp.float32)
    _c = (lambda a: a) if is_f32 else (lambda a: a.astype(compute_dtype))

    # Encoder: Linear + ReLU (only at the first layer step of each batch tile).
    @pl.when(l == 0)
    def _():
        xb = _c(x_ref[...])          # in-kernel cast (VPU, hides under MXU)
        h = jnp.dot(xb, w_enc_ref[...], preferred_element_type=jnp.float32)
        h = h + b_enc_ref[...]
        h_ref[...] = jnp.maximum(h, 0.0)

    # Hidden layer l.  PyTorch iterates (Linear, ReLU, Linear, ReLU, ...) and,
    # when residual=True, adds the input back around EACH entry (ReLU too).
    if n_layers > 0:
        h = h_ref[...]
        lin = jnp.dot(_c(h), w_hid_ref[0],
                      preferred_element_type=jnp.float32) + b_hid_ref[0]
        if residual:
            h = lin + h                    # x = Linear(x) + x
            h = jnp.maximum(h, 0.0) + h    # x = ReLU(x) + x
        else:
            h = jnp.maximum(lin, 0.0)
        h_ref[...] = h

    # Decoder: Linear + ReLU (only at the last layer step).
    @pl.when(l == last)
    def _():
        out = jnp.dot(_c(h_ref[...]), w_dec_ref[...],
                      preferred_element_type=jnp.float32) + b_dec_ref[...]
        o_ref[...] = jnp.maximum(out, 0.0).astype(o_ref.dtype)


def prepare_params(params, *, compute_dtype=jnp.float32, lane=128):
    """Pad feature dims to 128 lanes and cast MXU operands ONCE.

    Call this outside the per-forward hot path and reuse the result: it avoids
    an extra HBM read+write of every weight byte on every call.
    """
    w_enc, b_enc = params["w_enc"], params["b_enc"]       # (D_in, H), (1, H)
    w_hid, b_hid = params["w_hid"], params["b_hid"]       # (L, H, H), (L, 1, H)
    w_dec, b_dec = params["w_dec"], params["b_dec"]       # (H, D_out), (1, D_out)

    d_in, hidden = w_enc.shape
    n_layers = w_hid.shape[0]
    d_out = w_dec.shape[1]
    d_in_p, hid_p, d_out_p = (_round_up(d, lane) for d in (d_in, hidden, d_out))

    l_pad = max(n_layers, 1)              # keep >=1 layer block for BlockSpec
    if n_layers == 0:
        w_hid = jnp.zeros((1, hidden, hidden), w_enc.dtype)
        b_hid = jnp.zeros((1, 1, hidden), b_enc.dtype)

    return dict(
        w_enc=_pad_to(w_enc, (d_in_p, hid_p)).astype(compute_dtype),
        b_enc=_pad_to(b_enc, (1, hid_p)).astype(jnp.float32),
        w_hid=_pad_to(w_hid, (l_pad, hid_p, hid_p)).astype(compute_dtype),
        b_hid=_pad_to(b_hid, (l_pad, 1, hid_p)).astype(jnp.float32),
        w_dec=_pad_to(w_dec, (hid_p, d_out_p)).astype(compute_dtype),
        b_dec=_pad_to(b_dec, (1, d_out_p)).astype(jnp.float32),
        dims=dict(d_in=d_in, hidden=hidden, d_out=d_out, n_layers=n_layers,
                  d_in_p=d_in_p, hid_p=hid_p, d_out_p=d_out_p),
        compute_dtype=compute_dtype,
    )


def mlp_pallas(x, prepared, *, residual, max_batch_tile=512, out_dtype=None,
               vmem_fraction=0.875, sub=16):
    """x: (B, input_dim) in its native dtype.  prepared: prepare_params(...)."""
    dims = prepared["dims"]
    compute_dtype = prepared["compute_dtype"]
    d_in, d_out, n_layers = dims["d_in"], dims["d_out"], dims["n_layers"]
    d_in_p, hid_p, d_out_p = dims["d_in_p"], dims["hid_p"], dims["d_out_p"]

    B = x.shape[0]
    out_dtype = x.dtype if out_dtype is None else out_dtype
    l_steps = max(n_layers, 1)

    x_item = jnp.dtype(x.dtype).itemsize
    w_item = jnp.dtype(compute_dtype).itemsize
    o_item = jnp.dtype(out_dtype).itemsize

    # Device-derived VMEM budget (per TensorCore).
    vmem_budget = int(vmem_fraction * _vmem_capacity_bytes())

    # Batch-independent resident bytes: default double-buffered constants
    # (w_enc, w_dec, biases) + one double-buffered streamed hidden layer.
    fixed_bytes = 2 * ((d_in_p * hid_p + hid_p * hid_p + hid_p * d_out_p) * w_item
                       + (3 * hid_p + d_out_p) * 4)
    # Per-row bytes: double-buffered x/out tiles + f32 h scratch + ~2 f32 temps.
    per_row = 2 * d_in_p * x_item + 2 * d_out_p * o_item + 3 * hid_p * 4
    headroom_rows = max((vmem_budget - fixed_bytes) // per_row, sub)
    batch_tile_cap = max(sub, (min(max_batch_tile, int(headroom_rows)) // sub) * sub)

    # Balanced batch tiles; an even number of >= 2 steps keeps both v7x
    # TensorCores busy even at tiny B (negligible cost on 1-TC v5e/v6e).
    num_tiles = max(2, pl.cdiv(B, batch_tile_cap))
    if num_tiles % 2:
        num_tiles += 1
    batch_tile = _round_up(pl.cdiv(B, num_tiles), sub)
    b_pad = num_tiles * batch_tile

    # Zero-pad x (no dtype cast here -- the cast happens inside the kernel).
    x_p = _pad_to(x, (b_pad, d_in_p))

    kernel = functools.partial(_mlp_kernel, n_layers=n_layers,
                               residual=residual, compute_dtype=compute_dtype)

    grid_spec = pltpu.PrefetchScalarGridSpec(
        num_scalar_prefetch=0,
        grid=(num_tiles, l_steps),
        in_specs=[
            pl.BlockSpec((batch_tile, d_in_p), lambda i, l: (i, 0)),
            pl.BlockSpec((d_in_p, hid_p), lambda i, l: (0, 0)),
            pl.BlockSpec((1, hid_p), lambda i, l: (0, 0)),
            pl.BlockSpec((1, hid_p, hid_p), lambda i, l: (l, 0, 0)),
            pl.BlockSpec((1, 1, hid_p), lambda i, l: (l, 0, 0)),
            pl.BlockSpec((hid_p, d_out_p), lambda i, l: (0, 0)),
            pl.BlockSpec((1, d_out_p), lambda i, l: (0, 0)),
        ],
        out_specs=pl.BlockSpec((batch_tile, d_out_p), lambda i, l: (i, 0)),
        scratch_shapes=[pltpu.VMEM((batch_tile, hid_p), jnp.float32)],
    )

    flops = 2 * b_pad * (d_in_p * hid_p + n_layers * hid_p * hid_p
                         + hid_p * d_out_p)
    bytes_accessed = (b_pad * d_in_p * x_item + b_pad * d_out_p * o_item
                      + (d_in_p * hid_p + l_steps * hid_p * hid_p
                         + hid_p * d_out_p) * w_item
                      + ((l_steps + 2) * hid_p + d_out_p) * 4)

    out_p = pl.pallas_call(
        kernel,
        out_shape=jax.ShapeDtypeStruct((b_pad, d_out_p), out_dtype),
        grid_spec=grid_spec,
        compiler_params=pltpu.CompilerParams(
            dimension_semantics=("parallel", "arbitrary"),
            vmem_limit_bytes=vmem_budget),
        cost_estimate=pl.CostEstimate(flops=int(flops), transcendentals=0,
                                      bytes_accessed=int(bytes_accessed)),
    )(x_p, prepared["w_enc"], prepared["b_enc"], prepared["w_hid"],
      prepared["b_hid"], prepared["w_dec"], prepared["b_dec"])

    return out_p[:B, :d_out]


def make_params(key, input_dim, hidden_dim, output_dim, n_layers):
    """Deterministic synthetic parameters; weights stored as (in, out)."""
    ks = jax.random.split(key, 2 * n_layers + 4)
    ws, bs = 0.1, 0.05
    w_enc = ws * jax.random.normal(ks[0], (input_dim, hidden_dim), jnp.float32)
    b_enc = bs * jax.random.normal(ks[1], (1, hidden_dim), jnp.float32)
    w_dec = ws * jax.random.normal(ks[2], (hidden_dim, output_dim), jnp.float32)
    b_dec = bs * jax.random.normal(ks[3], (1, output_dim), jnp.float32)
    w_hid = jnp.stack([
        ws * jax.random.normal(ks[4 + 2 * i], (hidden_dim, hidden_dim),
                               jnp.float32) for i in range(n_layers)])
    b_hid = jnp.stack([
        bs * jax.random.normal(ks[5 + 2 * i], (1, hidden_dim), jnp.float32)
        for i in range(n_layers)])
    return dict(w_enc=w_enc, b_enc=b_enc, w_hid=w_hid, b_hid=b_hid,
                w_dec=w_dec, b_dec=b_dec)


def mlp_ref(x, params, *, residual):
    """Pure-JAX reference mirroring the PyTorch forward."""
    h = jnp.maximum(x @ params["w_enc"] + params["b_enc"][0], 0.0)
    for i in range(params["w_hid"].shape[0]):
        lin = h @ params["w_hid"][i] + params["b_hid"][i, 0]
        if residual:
            h = lin + h
            h = jnp.maximum(h, 0.0) + h
        else:
            h = jnp.maximum(lin, 0.0)
    return jnp.maximum(h @ params["w_dec"] + params["b_dec"][0], 0.0)


if __name__ == "__main__":
    # cfg: hidden_dim=32, layers=2, residual=True; input_dim=16, output_dim=8
    input_dim, hidden_dim, output_dim, n_layers = 16, 32, 8, 2

    key = jax.random.PRNGKey(0)
    kx, kx2, kp = jax.random.split(key, 3)
    params = make_params(kp, input_dim, hidden_dim, output_dim, n_layers)

    # Weights padded/cast ONCE, reused across all forwards below.
    prep_f32 = prepare_params(params, compute_dtype=jnp.float32)

    # 1) Small batch, f32 MXU operands: exact vs reference.
    x = jax.random.normal(kx, (16, input_dim), jnp.float32)
    out = jax.block_until_ready(mlp_pallas(x, prep_f32, residual=True))
    ref = mlp_ref(x, params, residual=True)
    assert out.shape == (16, output_dim)
    assert jnp.allclose(out, ref, atol=1e-5, rtol=1e-5), "f32 mismatch"

    # 2) Non-tile-multiple batch: balanced multi-step batch grid + padding.
    x2 = jax.random.normal(kx2, (300, input_dim), jnp.float32)
    out2 = jax.block_until_ready(mlp_pallas(x2, prep_f32, residual=True))
    ref2 = mlp_ref(x2, params, residual=True)
    assert out2.shape == (300, output_dim)
    assert jnp.allclose(out2, ref2, atol=1e-5, rtol=1e-5), "tiled mismatch"

    # 3) residual=False branch.
    out3 = jax.block_until_ready(mlp_pallas(x, prep_f32, residual=False))
    ref3 = mlp_ref(x, params, residual=False)
    assert jnp.allclose(out3, ref3, atol=1e-5, rtol=1e-5), "no-res mismatch"

    # 4) bf16 MXU operands (valid on all generations; v5e MXU is natively
    #    bf16).  Accumulation + ReLU/residual chain stay f32.  Loose tolerance
    #    is for this shallow config; keep f32 operands for deep residual nets.
    prep_bf16 = prepare_params(params, compute_dtype=jnp.bfloat16)
    out4 = jax.block_until_ready(mlp_pallas(x, prep_bf16, residual=True))
    assert jnp.allclose(out4, ref, atol=1e-1, rtol=5e-2), "bf16 mismatch"

    print("KERNEL_OK")
</pallas_src>

<mosaic_0001>
module attributes {stable_mosaic.version = 11 : i64} {
  func.func @_mlp_kernel(%arg0: i32, %arg1: i32, %arg2: memref<16x128xf32, #tpu.memory_space<vmem>>, %arg3: memref<128x128xf32, #tpu.memory_space<vmem>>, %arg4: memref<1x128xf32, #tpu.memory_space<vmem>>, %arg5: memref<1x128x128xf32, #tpu.memory_space<vmem>>, %arg6: memref<1x1x128xf32, #tpu.memory_space<vmem>>, %arg7: memref<128x128xf32, #tpu.memory_space<vmem>>, %arg8: memref<1x128xf32, #tpu.memory_space<vmem>>, %arg9: memref<16x128xf32, #tpu.memory_space<vmem>>, %arg10: memref<16x128xf32, #tpu.memory_space<vmem>>) attributes {dimension_semantics = [#tpu.dimension_semantics<parallel>, #tpu.dimension_semantics<arbitrary>], iteration_bounds = array<i64: 2, 2>, scalar_prefetch = 0 : i64, scratch_operands = 1 : i64, tpu.core_type = #tpu.core_type<tc>, window_params = [{transform_indices = @transform_0, window_bounds = array<i64: 16, 128>}, {pipeline_mode = #tpu.pipeline_mode<synchronous>, transform_indices = @transform_1, window_bounds = array<i64: 128, 128>}, {pipeline_mode = #tpu.pipeline_mode<synchronous>, transform_indices = @transform_2, window_bounds = array<i64: 1, 128>}, {transform_indices = @transform_3, window_bounds = array<i64: 1, 128, 128>}, {transform_indices = @transform_4, window_bounds = array<i64: 1, 1, 128>}, {pipeline_mode = #tpu.pipeline_mode<synchronous>, transform_indices = @transform_5, window_bounds = array<i64: 128, 128>}, {pipeline_mode = #tpu.pipeline_mode<synchronous>, transform_indices = @transform_6, window_bounds = array<i64: 1, 128>}, {transform_indices = @transform_7, window_bounds = array<i64: 16, 128>}]} {
    %c0_i32 = arith.constant 0 : i32
    %0 = arith.cmpi eq, %arg1, %c0_i32 : i32
    %1 = arith.extui %0 : i1 to i32
    %c0_i32_0 = arith.constant 0 : i32
    %2 = arith.cmpi ne, %1, %c0_i32_0 : i32
    scf.if %2 {
      %c0_12 = arith.constant 0 : index
      %c0_13 = arith.constant 0 : index
      %19 = vector.load %arg2[%c0_12, %c0_13] : memref<16x128xf32, #tpu.memory_space<vmem>>, vector<16x128xf32>
      %c0_14 = arith.constant 0 : index
      %c0_15 = arith.constant 0 : index
      %20 = vector.load %arg3[%c0_14, %c0_15] : memref<128x128xf32, #tpu.memory_space<vmem>>, vector<128x128xf32>
      %cst_16 = arith.constant dense<0.000000e+00> : vector<16x128xf32>
      %21 = tpu.matmul %19, %20, %cst_16 {dimension_numbers = #tpu.dot_dimension_numbers<[1], [0], [0], [1], [0, 0, 1, 1], [], []>} : vector<16x128xf32>, vector<128x128xf32>, vector<16x128xf32> -> vector<16x128xf32>
      %c0_17 = arith.constant 0 : index
      %c0_18 = arith.constant 0 : index
      %22 = vector.load %arg4[%c0_17, %c0_18] : memref<1x128xf32, #tpu.memory_space<vmem>>, vector<1x128xf32>
      %23 = vector.broadcast %22 : vector<1x128xf32> to vector<16x128xf32>
      %24 = arith.addf %21, %23 : vector<16x128xf32>
      %cst_19 = arith.constant 0.000000e+00 : f32
      %25 = vector.broadcast %cst_19 : f32 to vector<16x128xf32>
      %26 = arith.maximumf %24, %25 : vector<16x128xf32>
      %c0_20 = arith.constant 0 : index
      %c0_21 = arith.constant 0 : index
      %27 = vector.load %arg10[%c0_20, %c0_21] : memref<16x128xf32, #tpu.memory_space<vmem>>, vector<16x128xf32>
      tpu.vector_store %arg10[%c0_20, %c0_21], %26 {strides = array<i32>} : memref<16x128xf32, #tpu.memory_space<vmem>>, vector<16x128xf32>,
    } else {
    }
    %c0 = arith.constant 0 : index
    %c0_1 = arith.constant 0 : index
    %3 = vector.load %arg10[%c0, %c0_1] : memref<16x128xf32, #tpu.memory_space<vmem>>, vector<16x128xf32>
    %c0_2 = arith.constant 0 : index
    %c0_3 = arith.constant 0 : index
    %c0_4 = arith.constant 0 : index
    %4 = vector.load %arg5[%c0_2, %c0_3, %c0_4] : memref<1x128x128xf32, #tpu.memory_space<vmem>>, vector<1x128x128xf32>
    %5 = vector.shape_cast %4 : vector<1x128x128xf32> to vector<128x128xf32>
    %cst = arith.constant dense<0.000000e+00> : vector<16x128xf32>
    %6 = tpu.matmul %3, %5, %cst {dimension_numbers = #tpu.dot_dimension_numbers<[1], [0], [0], [1], [0, 0, 1, 1], [], []>} : vector<16x128xf32>, vector<128x128xf32>, vector<16x128xf32> -> vector<16x128xf32>
    %c0_5 = arith.constant 0 : index
    %c0_6 = arith.constant 0 : index
    %c0_7 = arith.constant 0 : index
    %7 = vector.load %arg6[%c0_5, %c0_6, %c0_7] : memref<1x1x128xf32, #tpu.memory_space<vmem>>, vector<1x1x128xf32>
    %8 = vector.shape_cast %7 : vector<1x1x128xf32> to vector<1x128xf32>
    %9 = vector.broadcast %8 : vector<1x128xf32> to vector<16x128xf32>
    %10 = arith.addf %6, %9 : vector<16x128xf32>
    %11 = arith.addf %10, %3 : vector<16x128xf32>
    %cst_8 = arith.constant 0.000000e+00 : f32
    %12 = vector.broadcast %cst_8 : f32 to vector<16x128xf32>
    %13 = arith.maximumf %11, %12 : vector<16x128xf32>
    %14 = arith.addf %13, %11 : vector<16x128xf32>
    %c0_9 = arith.constant 0 : index
    %c0_10 = arith.constant 0 : index
    %15 = vector.load %arg10[%c0_9, %c0_10] : memref<16x128xf32, #tpu.memory_space<vmem>>, vector<16x128xf32>
    tpu.vector_store %arg10[%c0_9, %c0_10], %14 {strides = array<i32>} : memref<16x128xf32, #tpu.memory_space<vmem>>, vector<16x128xf32>,
    %c1_i32 = arith.constant 1 : i32
    %16 = arith.cmpi eq, %arg1, %c1_i32 : i32
    %17 = arith.extui %16 : i1 to i32
    %c0_i32_11 = arith.constant 0 : i32
    %18 = arith.cmpi ne, %17, %c0_i32_11 : i32
    scf.if %18 {
      %c0_12 = arith.constant 0 : index
      %c0_13 = arith.constant 0 : index
      %19 = vector.load %arg10[%c0_12, %c0_13] : memref<16x128xf32, #tpu.memory_space<vmem>>, vector<16x128xf32>
      %c0_14 = arith.constant 0 : index
      %c0_15 = arith.constant 0 : index
      %20 = vector.load %arg7[%c0_14, %c0_15] : memref<128x128xf32, #tpu.memory_space<vmem>>, vector<128x128xf32>
      %cst_16 = arith.constant dense<0.000000e+00> : vector<16x128xf32>
      %21 = tpu.matmul %19, %20, %cst_16 {dimension_numbers = #tpu.dot_dimension_numbers<[1], [0], [0], [1], [0, 0, 1, 1], [], []>} : vector<16x128xf32>, vector<128x128xf32>, vector<16x128xf32> -> vector<16x128xf32>
      %c0_17 = arith.constant 0 : index
      %c0_18 = arith.constant 0 : index
      %22 = vector.load %arg8[%c0_17, %c0_18] : memref<1x128xf32, #tpu.memory_space<vmem>>, vector<1x128xf32>
      %23 = vector.broadcast %22 : vector<1x128xf32> to vector<16x128xf32>
      %24 = arith.addf %21, %23 : vector<16x128xf32>
      %cst_19 = arith.constant 0.000000e+00 : f32
      %25 = vector.broadcast %cst_19 : f32 to vector<16x128xf32>
      %26 = arith.maximumf %24, %25 : vector<16x128xf32>
      %c0_20 = arith.constant 0 : index
      %c0_21 = arith.constant 0 : index
      %27 = vector.load %arg9[%c0_20, %c0_21] : memref<16x128xf32, #tpu.memory_space<vmem>>, vector<16x128xf32>
      tpu.vector_store %arg9[%c0_20, %c0_21], %26 {strides = array<i32>} : memref<16x128xf32, #tpu.memory_space<vmem>>, vector<16x128xf32>,
    } else {
    }
    return
  }
  func.func @transform_0(%arg0: i32, %arg1: i32) -> (i32, i32) {
    %c0_i32 = arith.constant 0 : i32
    %c0_i32_0 = arith.constant 0 : i32
    return %arg0, %c0_i32 : i32, i32
  }
  func.func @transform_1(%arg0: i32, %arg1: i32) -> (i32, i32) {
    %c0_i32 = arith.constant 0 : i32
    %c0_i32_0 = arith.constant 0 : i32
    %c0_i32_1 = arith.constant 0 : i32
    return %c0_i32, %c0_i32_0 : i32, i32
  }
  func.func @transform_2(%arg0: i32, %arg1: i32) -> (i32, i32) {
    %c0_i32 = arith.constant 0 : i32
    %c0_i32_0 = arith.constant 0 : i32
    %c0_i32_1 = arith.constant 0 : i32
    return %c0_i32, %c0_i32_0 : i32, i32
  }
  func.func @transform_3(%arg0: i32, %arg1: i32) -> (i32, i32, i32) {
    %c0_i32 = arith.constant 0 : i32
    %c0_i32_0 = arith.constant 0 : i32
    %c0_i32_1 = arith.constant 0 : i32
    return %arg1, %c0_i32, %c0_i32_0 : i32, i32, i32
  }
  func.func @transform_4(%arg0: i32, %arg1: i32) -> (i32, i32, i32) {
    %c0_i32 = arith.constant 0 : i32
    %c0_i32_0 = arith.constant 0 : i32
    %c0_i32_1 = arith.constant 0 : i32
    return %arg1, %c0_i32, %c0_i32_0 : i32, i32, i32
  }
  func.func @transform_5(%arg0: i32, %arg1: i32) -> (i32, i32) {
    %c0_i32 = arith.constant 0 : i32
    %c0_i32_0 = arith.constant 0 : i32
    %c0_i32_1 = arith.constant 0 : i32
    return %c0_i32, %c0_i32_0 : i32, i32
  }
  func.func @transform_6(%arg0: i32, %arg1: i32) -> (i32, i32) {
    %c0_i32 = arith.constant 0 : i32
    %c0_i32_0 = arith.constant 0 : i32
    %c0_i32_1 = arith.constant 0 : i32
    return %c0_i32, %c0_i32_0 : i32, i32
  }
  func.func @transform_7(%arg0: i32, %arg1: i32) -> (i32, i32) {
    %c0_i32 = arith.constant 0 : i32
    %c0_i32_0 = arith.constant 0 : i32
    return %arg0, %c0_i32 : i32, i32
  }
}

</mosaic_0001>

<llo_original>
// kernel: tpu_custom_call.1
$region0: #{tpu_custom_call.1}
  #allocation0 [shape = 'u32[]', space=smem, size = 0x4, offset = 0x4, fixed_abs, tag = 'smem constant byte address 0x4 - core index']
  #allocation1 [shape = 'u32[144,128]{1,0:T(1,128)}', space=vmem, size = 0x12000, scoped, tag = 'internal scratch']
  #allocation2 [shape = 'f32[16,128]{1,0:T(8,128)}', space=vmem, size = 0x2000, scoped, tag = 'scratch operand']
  %s0 = inlined_call_operand.hbm [shape: f32[32,128], index: 0, kind: input, shape index: {}]
  %s1 = inlined_call_operand.hbm [shape: f32[128,128], index: 1, kind: input, shape index: {}]
  %s2 = inlined_call_operand.vmem [shape: f32[1,128], index: 2, kind: input, shape index: {}]
  %s3 = inlined_call_operand.hbm [shape: f32[2,128,128], index: 3, kind: input, shape index: {}]
  %s4 = inlined_call_operand.vmem [shape: f32[2,1,128], index: 4, kind: input, shape index: {}]
  %s5 = inlined_call_operand.hbm [shape: f32[128,128], index: 5, kind: input, shape index: {}]
  %s6 = inlined_call_operand.vmem [shape: f32[1,128], index: 6, kind: input, shape index: {}]
  %s7 = inlined_call_operand.hbm [shape: f32[32,128], index: 7, kind: output, shape index: {}]
  %s8 = sld [smem:[#allocation0]]
  $region85: #{tpu_custom_call.1} parent=0
    _
  %s10 = ssub.s32 1, %s8
  %s11 = scalar_select 0, %s10, %s8
  $region1: #{tpu_custom_call.1} parent=0
    #allocation3 [shape = 'u8[16384]{0}', space=vmem, size = 0x4000, scoped, tag = 'input window, operand 0']
    #allocation4 [shape = 's32[2]{0}', space=sflag, size = 0x8, scoped, tag = 'scoped memory for tpu_custom_call.1']
    #allocation5 [shape = 's32[2]{0}', space=sflag, size = 0x8, scoped, tag = 'scoped memory for tpu_custom_call.1']
    #allocation6 [shape = 'u8[65536]{0}', space=vmem, size = 0x10000, scoped, tag = 'input window, operand 1, single buffered']
    #allocation7 [shape = 's32[1]{0}', space=sflag, size = 0x4, scoped, tag = 'scoped memory for tpu_custom_call.1']
    #allocation8 [shape = 'u8[131072]{0}', space=vmem, size = 0x20000, scoped, tag = 'input window, operand 3']
    #allocation9 [shape = 'u8[65536]{0}', space=vmem, size = 0x10000, scoped, tag = 'input window, operand 5, single buffered']
    #allocation10 [shape = 'u8[16384]{0}', space=vmem, size = 0x4000, scoped, tag = 'output window, operand 0']
    %12 = vsyncpa [#allocation4], 0
    %s13 = scalar_lea.sflag [#allocation4], 1
    %14 = vsyncpa %s13, 0
    %15 = vsyncpa [#allocation7], 0
    %16 = vsyncpa [#allocation5], 0
    %s17 = scalar_lea.sflag [#allocation5], 1
    %18 = vsyncpa %s17, 0
    loop: start=0, step=1, limit=6
    $region2: #{tpu_custom_call.1} parent=1 // loop_pre_header
      _
    $region3: #{tpu_custom_call.1} parent=1 // loop_header
      %s20 = sphi 0, %s24
      %p21 = scmp.ge.s32.totalorder %s20, 6
      %s27 = sphi 0, %s39
      %s28 = sphi 0, %s35
      %s29 = sphi 0, %s27
      %s30 = sphi 0, %s28
      %s31 = sphi 0, %s29
      %s32 = sphi 0, %s30
      %s42 = sphi 0, %s44
      %s45 = sphi 0, %s42
      %s46 = sphi 0, %s45
      %s62 = sphi 0, %s46
      %s66 = sphi 0, %s66
      %s68 = sphi 0, %s66
      %s69 = sphi 0, %s68
      %s83 = sphi 0, %s69
      %s87 = sphi 0, %s87
      %s89 = sphi 0, %s87
      %s90 = sphi 0, %s89
      %s104 = sphi 0, %s90
      %s110 = sphi 0, %s112
      %s113 = sphi 0, %s110
      %s114 = sphi 0, %s113
      %s130 = sphi 0, %s114
      %s136 = sphi 0, %s138
      %s139 = sphi 0, %s136
      %s140 = sphi 0, %s139
      %s156 = sphi 0, %s140
      %s160 = sphi 0, %s160
      %s162 = sphi 0, %s160
      %s163 = sphi 0, %s162
      %s177 = sphi 0, %s163
      %s181 = sphi 0, %s181
      %s183 = sphi 0, %s181
      %s184 = sphi 0, %s183
      %s198 = sphi 0, %s184
      %s204 = sphi 0, %s206
      %s207 = sphi 0, %s204
      %s208 = sphi 0, %s207
      %s224 = sphi 0, %s208
    $region4: #{tpu_custom_call.1} parent=1 // loop_header_branch
      %23 = sbr.rel (%p21) target = $region8
    $region5: #{tpu_custom_call.1} parent=1 // loop_body
      %s25 = ssub.s32 %s20, 1
      %s26 = ssub.s32 %s20, 2
      %s33 = sadd.s32 1, %s28
      %p34 = scmp.ge.s32.totalorder %s33, 2
      %s35 = scalar_select %p34, 0, %s33
      %s36 = sadd.s32 1, %s27
      %s37 = scalar_select %p34, %s36, %s27
      %p38 = scmp.ge.s32.totalorder %s37, 2
      %s39 = scalar_select %p38, 0, %s37
      %s40 = ssub.s32 %s27, %s39
      %p41 = scmp.eq.s32.totalorder %s40, 0
      %s43 = sadd.s32 %s42, 1
      %s44 = scalar_select %p41, %s42, %s43
      %p47 = pneg %p41
      %p48 = scmp.eq.s32.totalorder %s20, 3
      %p49 = por %p47, %p48
      %p50 = scmp.ne.s32.totalorder %s42, %s45
      %p51 = scmp.eq.s32.totalorder %s20, 0
      %p52 = por %p50, %p51
      %p53 = scmp.ne.s32.totalorder %s42, %s45
      %p54 = scmp.eq.s32.totalorder %s25, 3
      %p55 = por %p53, %p54
      %p56 = scmp.ne.s32.totalorder %s45, %s46
      %p57 = scmp.eq.s32.totalorder %s25, 0
      %p58 = por %p56, %p57
      %p59 = scmp.ne.s32.totalorder %s45, %s46
      %p60 = scmp.eq.s32.totalorder %s26, 3
      %p61 = por %p59, %p60
      %p63 = scmp.ne.s32.totalorder %s46, %s62
      %p64 = scmp.eq.s32.totalorder %s26, 0
      %p65 = por %p63, %p64
      %s67 = sadd.s32 %s66, 1
      %p70 = scmp.eq.s32.totalorder %s20, 3
      %p71 = scmp.ne.s32.totalorder %s66, %s68
      %p72 = scmp.eq.s32.totalorder %s20, 0
      %p73 = por %p71, %p72
      %p74 = scmp.ne.s32.totalorder %s66, %s68
      %p75 = scmp.eq.s32.totalorder %s25, 3
      %p76 = por %p74, %p75
      %p77 = scmp.ne.s32.totalorder %s68, %s69
      %p78 = scmp.eq.s32.totalorder %s25, 0
      %p79 = por %p77, %p78
      %p80 = scmp.ne.s32.totalorder %s68, %s69
      %p81 = scmp.eq.s32.totalorder %s26, 3
      %p82 = por %p80, %p81
      %p84 = scmp.ne.s32.totalorder %s69, %s83
      %p85 = scmp.eq.s32.totalorder %s26, 0
      %p86 = por %p84, %p85
      %s88 = sadd.s32 %s87, 1
      %p91 = scmp.eq.s32.totalorder %s20, 3
      %p92 = scmp.ne.s32.totalorder %s87, %s89
      %p93 = scmp.eq.s32.totalorder %s20, 0
      %p94 = por %p92, %p93
      %p95 = scmp.ne.s32.totalorder %s87, %s89
      %p96 = scmp.eq.s32.totalorder %s25, 3
      %p97 = por %p95, %p96
      %p98 = scmp.ne.s32.totalorder %s89, %s90
      %p99 = scmp.eq.s32.totalorder %s25, 0
      %p100 = por %p98, %p99
      %p101 = scmp.ne.s32.totalorder %s89, %s90
      %p102 = scmp.eq.s32.totalorder %s26, 3
      %p103 = por %p101, %p102
      %p105 = scmp.ne.s32.totalorder %s90, %s104
      %p106 = scmp.eq.s32.totalorder %s26, 0
      %p107 = por %p105, %p106
      %s108 = ssub.s32 %s28, %s35
      %p109 = scmp.eq.s32.totalorder %s108, 0
      %s111 = sadd.s32 %s110, 1
      %s112 = scalar_select %p109, %s110, %s111
      %p115 = pneg %p109
      %p116 = scmp.eq.s32.totalorder %s20, 3
      %p117 = por %p115, %p116
      %p118 = scmp.ne.s32.totalorder %s110, %s113
      %p119 = scmp.eq.s32.totalorder %s20, 0
      %p120 = por %p118, %p119
      %p121 = scmp.ne.s32.totalorder %s110, %s113
      %p122 = scmp.eq.s32.totalorder %s25, 3
      %p123 = por %p121, %p122
      %p124 = scmp.ne.s32.totalorder %s113, %s114
      %p125 = scmp.eq.s32.totalorder %s25, 0
      %p126 = por %p124, %p125
      %p127 = scmp.ne.s32.totalorder %s113, %s114
      %p128 = scmp.eq.s32.totalorder %s26, 3
      %p129 = por %p127, %p128
      %p131 = scmp.ne.s32.totalorder %s114, %s130
      %p132 = scmp.eq.s32.totalorder %s26, 0
      %p133 = por %p131, %p132
      %s134 = ssub.s32 %s28, %s35
      %p135 = scmp.eq.s32.totalorder %s134, 0
      %s137 = sadd.s32 %s136, 1
      %s138 = scalar_select %p135, %s136, %s137
      %p141 = pneg %p135
      %p142 = scmp.eq.s32.totalorder %s20, 3
      %p143 = por %p141, %p142
      %p144 = scmp.ne.s32.totalorder %s136, %s139
      %p145 = scmp.eq.s32.totalorder %s20, 0
      %p146 = por %p144, %p145
      %p147 = scmp.ne.s32.totalorder %s136, %s139
      %p148 = scmp.eq.s32.totalorder %s25, 3
      %p149 = por %p147, %p148
      %p150 = scmp.ne.s32.totalorder %s139, %s140
      %p151 = scmp.eq.s32.totalorder %s25, 0
      %p152 = por %p150, %p151
      %p153 = scmp.ne.s32.totalorder %s139, %s140
      %p154 = scmp.eq.s32.totalorder %s26, 3
      %p155 = por %p153, %p154
      %p157 = scmp.ne.s32.totalorder %s140, %s156
      %p158 = scmp.eq.s32.totalorder %s26, 0
      %p159 = por %p157, %p158
      %s161 = sadd.s32 %s160, 1
      %p164 = scmp.eq.s32.totalorder %s20, 3
      %p165 = scmp.ne.s32.totalorder %s160, %s162
      %p166 = scmp.eq.s32.totalorder %s20, 0
      %p167 = por %p165, %p166
      %p168 = scmp.ne.s32.totalorder %s160, %s162
      %p169 = scmp.eq.s32.totalorder %s25, 3
      %p170 = por %p168, %p169
      %p171 = scmp.ne.s32.totalorder %s162, %s163
      %p172 = scmp.eq.s32.totalorder %s25, 0
      %p173 = por %p171, %p172
      %p174 = scmp.ne.s32.totalorder %s162, %s163
      %p175 = scmp.eq.s32.totalorder %s26, 3
      %p176 = por %p174, %p175
      %p178 = scmp.ne.s32.totalorder %s163, %s177
      %p179 = scmp.eq.s32.totalorder %s26, 0
      %p180 = por %p178, %p179
      %s182 = sadd.s32 %s181, 1
      %p185 = scmp.eq.s32.totalorder %s20, 3
      %p186 = scmp.ne.s32.totalorder %s181, %s183
      %p187 = scmp.eq.s32.totalorder %s20, 0
      %p188 = por %p186, %p187
      %p189 = scmp.ne.s32.totalorder %s181, %s183
      %p190 = scmp.eq.s32.totalorder %s25, 3
      %p191 = por %p189, %p190
      %p192 = scmp.ne.s32.totalorder %s183, %s184
      %p193 = scmp.eq.s32.totalorder %s25, 0
      %p194 = por %p192, %p193
      %p195 = scmp.ne.s32.totalorder %s183, %s184
      %p196 = scmp.eq.s32.totalorder %s26, 3
      %p197 = por %p195, %p196
      %p199 = scmp.ne.s32.totalorder %s184, %s198
      %p200 = scmp.eq.s32.totalorder %s26, 0
      %p201 = por %p199, %p200
      %s202 = ssub.s32 %s27, %s39
      %p203 = scmp.eq.s32.totalorder %s202, 0
      %s205 = sadd.s32 %s204, 1
      %s206 = scalar_select %p203, %s204, %s205
      %p209 = pneg %p203
      %p210 = scmp.eq.s32.totalorder %s20, 3
      %p211 = por %p209, %p210
      %p212 = scmp.ne.s32.totalorder %s204, %s207
      %p213 = scmp.eq.s32.totalorder %s20, 0
      %p214 = por %p212, %p213
      %p215 = scmp.ne.s32.totalorder %s204, %s207
      %p216 = scmp.eq.s32.totalorder %s25, 3
      %p217 = por %p215, %p216
      %p218 = scmp.ne.s32.totalorder %s207, %s208
      %p219 = scmp.eq.s32.totalorder %s25, 0
      %p220 = por %p218, %p219
      %p221 = scmp.ne.s32.totalorder %s207, %s208
      %p222 = scmp.eq.s32.totalorder %s26, 3
      %p223 = por %p221, %p222
      %p225 = scmp.ne.s32.totalorder %s208, %s224
      %p226 = scmp.eq.s32.totalorder %s26, 0
      %p227 = por %p225, %p226
      %p228 = scmp.le.s32.totalorder 1, %s20
      %p229 = scmp.lt.s32.totalorder %s20, 5
      %p230 = pnand %p228, %p229
      %p231 = pneg %p230
      // Predicated region
      $region9: #{tpu_custom_call.1} parent=5 // pred_check
        _
      $region10: #{tpu_custom_call.1} parent=5 // pred_check_branch
        %233 = sbr.rel (%p230) target = $region12
      $region11: #{tpu_custom_call.1} parent=5 // pred_region
        %s234 = ssub.s32 %s20, 1
        // Predicated region
        $region13: #{tpu_custom_call.1} parent=11 // pred_check
          %p235 = pneg %p79
        $region14: #{tpu_custom_call.1} parent=11 // pred_check_branch
          %237 = sbr.rel (%p235) target = $region16
        $region15: #{tpu_custom_call.1} parent=11 // pred_region
          %s239 = ssub.s32 2048, 2048
          %240 = vsyncadd [#allocation7], %s239
          %s241 = sshll.u32 [#allocation6], 4
          %s242 = int_to_ptr.vmem [resolvable:$true] %s241
          %247 = dma.hbm_to_vmem [thread:$0]  %s1, 2048, %s242, [#allocation7], 128, 128, 8
        $region16: #{tpu_custom_call.1} parent=11 // pred_fallthru
          _
        // Predicated region
        $region17: #{tpu_custom_call.1} parent=11 // pred_check
          %p248 = pneg %p100
        $region18: #{tpu_custom_call.1} parent=11 // pred_check_branch
          %250 = sbr.rel (%p248) target = $region20
        $region19: #{tpu_custom_call.1} parent=11 // pred_region
          _
        $region20: #{tpu_custom_call.1} parent=11 // pred_fallthru
          _
        // Predicated region
        $region21: #{tpu_custom_call.1} parent=11 // pred_check
          %p251 = pneg %p173
        $region22: #{tpu_custom_call.1} parent=11 // pred_check_branch
          %253 = sbr.rel (%p251) target = $region24
        $region23: #{tpu_custom_call.1} parent=11 // pred_region
          %s255 = ssub.s32 2048, 2048
          %256 = vsyncadd [#allocation7], %s255
          %s257 = sshll.u32 [#allocation9], 4
          %s258 = int_to_ptr.vmem [resolvable:$true] %s257
          %263 = dma.hbm_to_vmem [thread:$0]  %s5, 2048, %s258, [#allocation7], 128, 128, 8
        $region24: #{tpu_custom_call.1} parent=11 // pred_fallthru
          _
        // Predicated region
        $region25: #{tpu_custom_call.1} parent=11 // pred_check
          %p264 = pneg %p194
        $region26: #{tpu_custom_call.1} parent=11 // pred_check_branch
          %266 = sbr.rel (%p264) target = $region28
        $region27: #{tpu_custom_call.1} parent=11 // pred_region
          _
        $region28: #{tpu_custom_call.1} parent=11 // pred_fallthru
          _
      $region12: #{tpu_custom_call.1} parent=5 // pred_fallthru
        _
      %p267 = scmp.lt.s32.totalorder %s20, 4
      // Predicated region
      $region29: #{tpu_custom_call.1} parent=5 // pred_check
        %p268 = pneg %p267
      $region30: #{tpu_custom_call.1} parent=5 // pred_check_branch
        %270 = sbr.rel (%p268) target = $region32
      $region31: #{tpu_custom_call.1} parent=5 // pred_region
        // Predicated region
        $region33: #{tpu_custom_call.1} parent=31 // pred_check
          %p271 = pneg %p52
        $region34: #{tpu_custom_call.1} parent=31 // pred_check_branch
          %273 = sbr.rel (%p271) target = $region36
        $region35: #{tpu_custom_call.1} parent=31 // pred_region
          %s274 = sand.u32 %s20, 1
          %s275 = scalar_lea.sflag [#allocation4], %s274
          %s276 = sand.u32 %s42, 1
          %s277 = smul.addr %s276, 16
          %s278 = scalar_lea.vmem [#allocation3], %s277
          %s279 = smul.u32 2, %s27
          %s281 = ssub.s32 256, 256
          %282 = vsyncadd %s275, %s281
          %s283 = smul.addr %s279, 128
          %s284 = scalar_lea.hbm %s0, %s283
          %s285 = sshll.u32 %s278, 4
          %s286 = int_to_ptr.vmem [resolvable:$true] %s285
          %291 = dma.hbm_to_vmem [thread:$0]  %s284, 256, %s286, %s275, 128, 128, 8
        $region36: #{tpu_custom_call.1} parent=31 // pred_fallthru
          _
        // Predicated region
        $region37: #{tpu_custom_call.1} parent=31 // pred_check
          %p292 = pneg %p120
        $region38: #{tpu_custom_call.1} parent=31 // pred_check_branch
          %294 = sbr.rel (%p292) target = $region40
        $region39: #{tpu_custom_call.1} parent=31 // pred_region
          %s295 = sand.u32 %s20, 1
          %s296 = scalar_lea.sflag [#allocation4], %s295
          %s297 = sand.u32 %s110, 1
          %s298 = smul.addr %s297, 128
          %s299 = scalar_lea.vmem [#allocation8], %s298
          %s301 = ssub.s32 2048, 2048
          %302 = vsyncadd %s296, %s301
          %s303 = smul.addr %s28, 16
          %s304 = smul.addr %s303, 128
          %s305 = scalar_lea.hbm %s3, %s304
          %s306 = sshll.u32 %s299, 4
          %s307 = int_to_ptr.vmem [resolvable:$true] %s306
          %312 = dma.hbm_to_vmem [thread:$0]  %s305, 2048, %s307, %s296, 128, 128, 8
        $region40: #{tpu_custom_call.1} parent=31 // pred_fallthru
          _
        // Predicated region
        $region41: #{tpu_custom_call.1} parent=31 // pred_check
          %p313 = pneg %p146
        $region42: #{tpu_custom_call.1} parent=31 // pred_check_branch
          %315 = sbr.rel (%p313) target = $region44
        $region43: #{tpu_custom_call.1} parent=31 // pred_region
          %p316 = scmp.lt.s32.totalorder %s28, 1
          %s317 = scalar_select %p316, %s28, 1
          %s318 = scalar_lea.vmem %s4, %s317
        $region44: #{tpu_custom_call.1} parent=31 // pred_fallthru
          _
      $region32: #{tpu_custom_call.1} parent=5 // pred_fallthru
        _
      %p319 = scmp.le.s32.totalorder 1, %s20
      %p320 = scmp.lt.s32.totalorder %s20, 5
      %p321 = pnand %p319, %p320
      %p322 = pneg %p321
      // Predicated region
      $region45: #{tpu_custom_call.1} parent=5 // pred_check
        _
      $region46: #{tpu_custom_call.1} parent=5 // pred_check_branch
        %324 = sbr.rel (%p321) target = $region48
      $region47: #{tpu_custom_call.1} parent=5 // pred_region
        %s325 = ssub.s32 %s20, 1
        %s326 = sand.u32 %s25, 1
        %s327 = scalar_lea.sflag [#allocation4], %s326
        %s328 = sand.u32 %s45, 1
        %s329 = smul.addr %s328, 16
        %s330 = scalar_lea.vmem [#allocation3], %s329
        // Predicated region
        $region49: #{tpu_custom_call.1} parent=47 // pred_check
          %p331 = pneg %p58
        $region50: #{tpu_custom_call.1} parent=47 // pred_check_branch
          %333 = sbr.rel (%p331) target = $region52
        $region51: #{tpu_custom_call.1} parent=47 // pred_region
          %334 = dma.done %s327, 256
        $region52: #{tpu_custom_call.1} parent=47 // pred_fallthru
          _
        // Predicated region
        $region53: #{tpu_custom_call.1} parent=47 // pred_check
          %p335 = pneg %p79
        $region54: #{tpu_custom_call.1} parent=47 // pred_check_branch
          %337 = sbr.rel (%p335) target = $region56
        $region55: #{tpu_custom_call.1} parent=47 // pred_region
          %338 = dma.done [#allocation7], 2048
        $region56: #{tpu_custom_call.1} parent=47 // pred_fallthru
          _
        %s339 = sand.u32 %s25, 1
        %s340 = scalar_lea.sflag [#allocation4], %s339
        %s341 = sand.u32 %s113, 1
        %s342 = smul.addr %s341, 128
        %s343 = scalar_lea.vmem [#allocation8], %s342
        // Predicated region
        $region57: #{tpu_custom_call.1} parent=47 // pred_check
          %p344 = pneg %p126
        $region58: #{tpu_custom_call.1} parent=47 // pred_check_branch
          %346 = sbr.rel (%p344) target = $region60
        $region59: #{tpu_custom_call.1} parent=47 // pred_region
          %347 = dma.done %s340, 2048
        $region60: #{tpu_custom_call.1} parent=47 // pred_fallthru
          _
        // Predicated region
        $region61: #{tpu_custom_call.1} parent=47 // pred_check
          %p348 = pneg %p173
        $region62: #{tpu_custom_call.1} parent=47 // pred_check_branch
          %350 = sbr.rel (%p348) target = $region64
        $region63: #{tpu_custom_call.1} parent=47 // pred_region
          %351 = dma.done [#allocation7], 2048
        $region64: #{tpu_custom_call.1} parent=47 // pred_fallthru
          _
        %s352 = sand.u32 %s25, 1
        %s353 = scalar_lea.sflag [#allocation4], %s352
        %s354 = sand.u32 %s45, 1
        %s355 = smul.addr %s354, 16
        %s356 = scalar_lea.vmem [#allocation3], %s355
        %p357 = pneg %p58
        %p358 = pneg %p55
        %p359 = pneg %p79
        %p360 = pneg %p76
        %p361 = pneg %p100
        %p362 = pneg %p97
        %s363 = sand.u32 %s25, 1
        %s364 = scalar_lea.sflag [#allocation4], %s363
        %s365 = sand.u32 %s113, 1
        %s366 = smul.addr %s365, 128
        %s367 = scalar_lea.vmem [#allocation8], %s366
        %p368 = pneg %p126
        %p369 = pneg %p123
        %p370 = scmp.lt.s32.totalorder %s30, 1
        %s371 = scalar_select %p370, %s30, 1
        %s372 = scalar_lea.vmem %s4, %s371
        %p373 = pneg %p152
        %p374 = pneg %p149
        %p375 = pneg %p173
        %p376 = pneg %p170
        %p377 = pneg %p194
        %p378 = pneg %p191
        %p379 = pneg %p220
        %p380 = pneg %p217
        %s381 = sand.u32 %s207, 1
        %s382 = scalar_lea.sflag [#allocation5], %s381
        %s383 = sand.u32 %s207, 1
        %s384 = smul.addr %s383, 16
        %s385 = scalar_lea.vmem [#allocation10], %s384
        %s386 = smul.u32 2, %s29
        %p387 = scmp.lt.s32.totalorder %s30, 1
        %s388 = scalar_select %p387, %s30, 1
        %s389 = scalar_lea.vmem %s4, %s388
        %s390 = smul.u32 2, %s29
        %p391 = scmp.eq.s32.totalorder %s30, 0
        // Predicated region
        $region65: #{tpu_custom_call.1} parent=47 // pred_check
          %p392 = pneg %p391
        $region66: #{tpu_custom_call.1} parent=47 // pred_check_branch
          %394 = sbr.rel (%p392) target = $region68
        $region67: #{tpu_custom_call.1} parent=47 // pred_region
          %v395 = vld [vmem:[%s330] sm:$0xff]
          %v396 = vld [vmem:[%s330 + $0x8] sm:$0xff]
          %v397 = vld [vmem:[#allocation6] sm:$0xff]
          %v398 = vld [vmem:[#allocation6 + $0x8] sm:$0xff]
          %v399 = vld [vmem:[#allocation6 + $0x10] sm:$0xff]
          %v400 = vld [vmem:[#allocation6 + $0x18] sm:$0xff]
          %v401 = vld [vmem:[#allocation6 + $0x20] sm:$0xff]
          %v402 = vld [vmem:[#allocation6 + $0x28] sm:$0xff]
          %v403 = vld [vmem:[#allocation6 + $0x30] sm:$0xff]
          %v404 = vld [vmem:[#allocation6 + $0x38] sm:$0xff]
          %v405 = vld [vmem:[#allocation6 + $0x40] sm:$0xff]
          %v406 = vld [vmem:[#allocation6 + $0x48] sm:$0xff]
          %v407 = vld [vmem:[#allocation6 + $0x50] sm:$0xff]
          %v408 = vld [vmem:[#allocation6 + $0x58] sm:$0xff]
          %v409 = vld [vmem:[#allocation6 + $0x60] sm:$0xff]
          %v410 = vld [vmem:[#allocation6 + $0x68] sm:$0xff]
          %v411 = vld [vmem:[#allocation6 + $0x70] sm:$0xff]
          %v412 = vld [vmem:[#allocation6 + $0x78] sm:$0xff]
          %v413 = vld [vmem:[%s2] sm:$0x1]
          %v415 = vlaneseq
          %v416 = vshrl.u32 %v415, 7
          %v417 = vsub.s32 0, %v416
          %v418 = vrot.slane %v413, %v417
          %420 = vmatprep.subr.mxu0 0.0
          %421 = vmatpush1.msra.mxu0 %v397
          %422 = vmatprep.subr.mxu0 0.0
          %423 = vmatpush1.msra.mxu0 %v398
          %424 = vmatprep.subr.mxu0 0.0
          %425 = vmatpush1.msra.mxu0 %v399
          %426 = vmatprep.subr.mxu0 0.0
          %427 = vmatpush1.msra.mxu0 %v400
          %428 = vmatprep.subr.mxu0 0.0
          %429 = vmatpush1.msra.mxu0 %v401
          %430 = vmatprep.subr.mxu0 0.0
          %431 = vmatpush1.msra.mxu0 %v402
          %432 = vmatprep.subr.mxu0 0.0
          %433 = vmatpush1.msra.mxu0 %v403
          %434 = vmatprep.subr.mxu0 0.0
          %435 = vmatpush1.msra.mxu0 %v404
          %436 = vmatprep.subr.mxu0 0.0
          %437 = vmatpush1.msra.mxu0 %v405
          %438 = vmatprep.subr.mxu0 0.0
          %439 = vmatpush1.msra.mxu0 %v406
          %440 = vmatprep.subr.mxu0 0.0
          %441 = vmatpush1.msra.mxu0 %v407
          %442 = vmatprep.subr.mxu0 0.0
          %443 = vmatpush1.msra.mxu0 %v408
          %444 = vmatprep.subr.mxu0 0.0
          %445 = vmatpush1.msra.mxu0 %v409
          %446 = vmatprep.subr.mxu0 0.0
          %447 = vmatpush1.msra.mxu0 %v410
          %448 = vmatprep.subr.mxu0 0.0
          %449 = vmatpush1.msra.mxu0 %v411
          %450 = vmatprep.subr.mxu0 0.0
          %451 = vmatpush1.msra.mxu0 %v412
          %452 = vmatprep.subr.mxu0 0.0
          %453 = vmatpush1.msra.mxu0 0.0
          %454 = vmatprep.subr.mxu0 0.0
          %455 = vmatpush1.msra.mxu0 0.0
          %456 = vmatprep.subr.mxu0 0.0
          %457 = vmatpush1.msra.mxu0 0.0
          %458 = vmatprep.subr.mxu0 0.0
          %459 = vmatpush1.msra.mxu0 0.0
          %460 = vmatprep.subr.mxu0 0.0
          %461 = vmatpush1.msra.mxu0 0.0
          %462 = vmatprep.subr.mxu0 0.0
          %463 = vmatpush1.msra.mxu0 0.0
          %464 = vmatprep.subr.mxu0 0.0
          %465 = vmatpush1.msra.mxu0 0.0
          %466 = vmatprep.subr.mxu0 0.0
          %467 = vmatpush1.msra.mxu0 0.0
          %468 = vmatprep.subr.mxu0 0.0
          %469 = vmatpush1.msra.mxu0 0.0
          %470 = vmatprep.subr.mxu0 0.0
          %471 = vmatpush1.msra.mxu0 0.0
          %472 = vmatprep.subr.mxu0 0.0
          %473 = vmatpush1.msra.mxu0 0.0
          %474 = vmatprep.subr.mxu0 0.0
          %475 = vmatpush1.msra.mxu0 0.0
          %476 = vmatprep.subr.mxu0 0.0
          %477 = vmatpush1.msra.mxu0 0.0
          %478 = vmatprep.subr.mxu0 0.0
          %479 = vmatpush1.msra.mxu0 0.0
          %480 = vmatprep.subr.mxu0 0.0
          %481 = vmatpush1.msra.mxu0 0.0
          %482 = vmatprep.subr.mxu0 0.0
          %483 = vmatpush1.msra.mxu0 0.0
          %484 = vmatprep.mubr.f32.mxu0 0.0
          %485 = vmatmul.mubr.f32.gmra.mrb[0].mxu0 %v395
          %v486 = vpop.f32.mrb[0].mxu0
          %v487 = vadd.f32 %v418, %v486
          %v488 = vpop.f32.mrb[0].mxu0
          %489 = vmatprep.mubr.f32.mxu0 0.0
          %490 = vmatmul.mubr.f32.gmra.mrb[0].mxu0 %v396
          %v491 = vpop.f32.mrb[0].mxu0
          %v492 = vadd.f32 %v418, %v491
          %v493 = vpop.f32.mrb[0].mxu0
          %494 = vdwg.mxu0
          %v495 = vmax.f32 %v487, 0.0
          %v496 = vmax.f32 %v492, 0.0
          %497 = vst [vmem:[#allocation2] sm:$0xff] %v495
          %498 = vst [vmem:[#allocation2 + $0x8] sm:$0xff] %v496
        $region68: #{tpu_custom_call.1} parent=47 // pred_fallthru
          _
        %v499 = vld [vmem:[#allocation2] sm:$0xff]
        %v500 = vld [vmem:[#allocation2 + $0x8] sm:$0xff]
        %v501 = vld [vmem:[%s343] sm:$0xff]
        %v502 = vld [vmem:[%s343 + $0x8] sm:$0xff]
        %v503 = vld [vmem:[%s343 + $0x10] sm:$0xff]
        %v504 = vld [vmem:[%s343 + $0x18] sm:$0xff]
        %v505 = vld [vmem:[%s343 + $0x20] sm:$0xff]
        %v506 = vld [vmem:[%s343 + $0x28] sm:$0xff]
        %v507 = vld [vmem:[%s343 + $0x30] sm:$0xff]
        %v508 = vld [vmem:[%s343 + $0x38] sm:$0xff]
        %v509 = vld [vmem:[%s343 + $0x40] sm:$0xff]
        %v510 = vld [vmem:[%s343 + $0x48] sm:$0xff]
        %v511 = vld [vmem:[%s343 + $0x50] sm:$0xff]
        %v512 = vld [vmem:[%s343 + $0x58] sm:$0xff]
        %v513 = vld [vmem:[%s343 + $0x60] sm:$0xff]
        %v514 = vld [vmem:[%s343 + $0x68] sm:$0xff]
        %v515 = vld [vmem:[%s343 + $0x70] sm:$0xff]
        %v516 = vld [vmem:[%s343 + $0x78] sm:$0xff]
        %v517 = vld [vmem:[%s389] sm:$0x1]
        %v519 = vlaneseq
        %v520 = vshrl.u32 %v519, 7
        %v521 = vsub.s32 0, %v520
        %v522 = vrot.slane %v517, %v521
        %524 = vmatprep.subr.mxu0 0.0
        %525 = vmatpush1.msra.mxu0 %v501
        %526 = vmatprep.subr.mxu0 0.0
        %527 = vmatpush1.msra.mxu0 %v502
        %528 = vmatprep.subr.mxu0 0.0
        %529 = vmatpush1.msra.mxu0 %v503
        %530 = vmatprep.subr.mxu0 0.0
        %531 = vmatpush1.msra.mxu0 %v504
        %532 = vmatprep.subr.mxu0 0.0
        %533 = vmatpush1.msra.mxu0 %v505
        %534 = vmatprep.subr.mxu0 0.0
        %535 = vmatpush1.msra.mxu0 %v506
        %536 = vmatprep.subr.mxu0 0.0
        %537 = vmatpush1.msra.mxu0 %v507
        %538 = vmatprep.subr.mxu0 0.0
        %539 = vmatpush1.msra.mxu0 %v508
        %540 = vmatprep.subr.mxu0 0.0
        %541 = vmatpush1.msra.mxu0 %v509
        %542 = vmatprep.subr.mxu0 0.0
        %543 = vmatpush1.msra.mxu0 %v510
        %544 = vmatprep.subr.mxu0 0.0
        %545 = vmatpush1.msra.mxu0 %v511
        %546 = vmatprep.subr.mxu0 0.0
        %547 = vmatpush1.msra.mxu0 %v512
        %548 = vmatprep.subr.mxu0 0.0
        %549 = vmatpush1.msra.mxu0 %v513
        %550 = vmatprep.subr.mxu0 0.0
        %551 = vmatpush1.msra.mxu0 %v514
        %552 = vmatprep.subr.mxu0 0.0
        %553 = vmatpush1.msra.mxu0 %v515
        %554 = vmatprep.subr.mxu0 0.0
        %555 = vmatpush1.msra.mxu0 %v516
        %556 = vmatprep.subr.mxu0 0.0
        %557 = vmatpush1.msra.mxu0 0.0
        %558 = vmatprep.subr.mxu0 0.0
        %559 = vmatpush1.msra.mxu0 0.0
        %560 = vmatprep.subr.mxu0 0.0
        %561 = vmatpush1.msra.mxu0 0.0
        %562 = vmatprep.subr.mxu0 0.0
        %563 = vmatpush1.msra.mxu0 0.0
        %564 = vmatprep.subr.mxu0 0.0
        %565 = vmatpush1.msra.mxu0 0.0
        %566 = vmatprep.subr.mxu0 0.0
        %567 = vmatpush1.msra.mxu0 0.0
        %568 = vmatprep.subr.mxu0 0.0
        %569 = vmatpush1.msra.mxu0 0.0
        %570 = vmatprep.subr.mxu0 0.0
        %571 = vmatpush1.msra.mxu0 0.0
        %572 = vmatprep.subr.mxu0 0.0
        %573 = vmatpush1.msra.mxu0 0.0
        %574 = vmatprep.subr.mxu0 0.0
        %575 = vmatpush1.msra.mxu0 0.0
        %576 = vmatprep.subr.mxu0 0.0
        %577 = vmatpush1.msra.mxu0 0.0
        %578 = vmatprep.subr.mxu0 0.0
        %579 = vmatpush1.msra.mxu0 0.0
        %580 = vmatprep.subr.mxu0 0.0
        %581 = vmatpush1.msra.mxu0 0.0
        %582 = vmatprep.subr.mxu0 0.0
        %583 = vmatpush1.msra.mxu0 0.0
        %584 = vmatprep.subr.mxu0 0.0
        %585 = vmatpush1.msra.mxu0 0.0
        %586 = vmatprep.subr.mxu0 0.0
        %587 = vmatpush1.msra.mxu0 0.0
        %588 = vmatprep.mubr.f32.mxu0 0.0
        %589 = vmatmul.mubr.f32.gmra.mrb[0].mxu0 %v499
        %v590 = vpop.f32.mrb[0].mxu0
        %v591 = vadd.f32 %v522, %v590
        %v592 = vpop.f32.mrb[0].mxu0
        %593 = vmatprep.mubr.f32.mxu0 0.0
        %594 = vmatmul.mubr.f32.gmra.mrb[0].mxu0 %v500
        %v595 = vpop.f32.mrb[0].mxu0
        %v596 = vadd.f32 %v522, %v595
        %v597 = vpop.f32.mrb[0].mxu0
        %598 = vdwg.mxu0
        %v599 = vadd.f32 %v591, %v499
        %v600 = vadd.f32 %v596, %v500
        %v601 = vmax.f32 %v599, 0.0
        %v602 = vmax.f32 %v600, 0.0
        %v603 = vadd.f32 %v601, %v599
        %v604 = vadd.f32 %v602, %v600
        %605 = vst [vmem:[#allocation2] sm:$0xff] %v603
        %606 = vst [vmem:[#allocation2 + $0x8] sm:$0xff] %v604
        %p607 = scmp.eq.s32.totalorder %s30, 1
        // Predicated region
        $region69: #{tpu_custom_call.1} parent=47 // pred_check
          %p608 = pneg %p607
        $region70: #{tpu_custom_call.1} parent=47 // pred_check_branch
          %610 = sbr.rel (%p608) target = $region72
        $region71: #{tpu_custom_call.1} parent=47 // pred_region
          %v611 = vld [vmem:[#allocation2] sm:$0xff]
          %v612 = vld [vmem:[#allocation2 + $0x8] sm:$0xff]
          %v613 = vld [vmem:[#allocation9] sm:$0xff]
          %v614 = vld [vmem:[#allocation9 + $0x8] sm:$0xff]
          %v615 = vld [vmem:[#allocation9 + $0x10] sm:$0xff]
          %v616 = vld [vmem:[#allocation9 + $0x18] sm:$0xff]
          %v617 = vld [vmem:[#allocation9 + $0x20] sm:$0xff]
          %v618 = vld [vmem:[#allocation9 + $0x28] sm:$0xff]
          %v619 = vld [vmem:[#allocation9 + $0x30] sm:$0xff]
          %v620 = vld [vmem:[#allocation9 + $0x38] sm:$0xff]
          %v621 = vld [vmem:[#allocation9 + $0x40] sm:$0xff]
          %v622 = vld [vmem:[#allocation9 + $0x48] sm:$0xff]
          %v623 = vld [vmem:[#allocation9 + $0x50] sm:$0xff]
          %v624 = vld [vmem:[#allocation9 + $0x58] sm:$0xff]
          %v625 = vld [vmem:[#allocation9 + $0x60] sm:$0xff]
          %v626 = vld [vmem:[#allocation9 + $0x68] sm:$0xff]
          %v627 = vld [vmem:[#allocation9 + $0x70] sm:$0xff]
          %v628 = vld [vmem:[#allocation9 + $0x78] sm:$0xff]
          %v629 = vld [vmem:[%s6] sm:$0x1]
          %v631 = vlaneseq
          %v632 = vshrl.u32 %v631, 7
          %v633 = vsub.s32 0, %v632
          %v634 = vrot.slane %v629, %v633
          %636 = vmatprep.subr.mxu0 0.0
          %637 = vmatpush1.msra.mxu0 %v613
          %638 = vmatprep.subr.mxu0 0.0
          %639 = vmatpush1.msra.mxu0 %v614
          %640 = vmatprep.subr.mxu0 0.0
          %641 = vmatpush1.msra.mxu0 %v615
          %642 = vmatprep.subr.mxu0 0.0
          %643 = vmatpush1.msra.mxu0 %v616
          %644 = vmatprep.subr.mxu0 0.0
          %645 = vmatpush1.msra.mxu0 %v617
          %646 = vmatprep.subr.mxu0 0.0
          %647 = vmatpush1.msra.mxu0 %v618
          %648 = vmatprep.subr.mxu0 0.0
          %649 = vmatpush1.msra.mxu0 %v619
          %650 = vmatprep.subr.mxu0 0.0
          %651 = vmatpush1.msra.mxu0 %v620
          %652 = vmatprep.subr.mxu0 0.0
          %653 = vmatpush1.msra.mxu0 %v621
          %654 = vmatprep.subr.mxu0 0.0
          %655 = vmatpush1.msra.mxu0 %v622
          %656 = vmatprep.subr.mxu0 0.0
          %657 = vmatpush1.msra.mxu0 %v623
          %658 = vmatprep.subr.mxu0 0.0
          %659 = vmatpush1.msra.mxu0 %v624
          %660 = vmatprep.subr.mxu0 0.0
          %661 = vmatpush1.msra.mxu0 %v625
          %662 = vmatprep.subr.mxu0 0.0
          %663 = vmatpush1.msra.mxu0 %v626
          %664 = vmatprep.subr.mxu0 0.0
          %665 = vmatpush1.msra.mxu0 %v627
          %666 = vmatprep.subr.mxu0 0.0
          %667 = vmatpush1.msra.mxu0 %v628
          %668 = vmatprep.subr.mxu0 0.0
          %669 = vmatpush1.msra.mxu0 0.0
          %670 = vmatprep.subr.mxu0 0.0
          %671 = vmatpush1.msra.mxu0 0.0
          %672 = vmatprep.subr.mxu0 0.0
          %673 = vmatpush1.msra.mxu0 0.0
          %674 = vmatprep.subr.mxu0 0.0
          %675 = vmatpush1.msra.mxu0 0.0
          %676 = vmatprep.subr.mxu0 0.0
          %677 = vmatpush1.msra.mxu0 0.0
          %678 = vmatprep.subr.mxu0 0.0
          %679 = vmatpush1.msra.mxu0 0.0
          %680 = vmatprep.subr.mxu0 0.0
          %681 = vmatpush1.msra.mxu0 0.0
          %682 = vmatprep.subr.mxu0 0.0
          %683 = vmatpush1.msra.mxu0 0.0
          %684 = vmatprep.subr.mxu0 0.0
          %685 = vmatpush1.msra.mxu0 0.0
          %686 = vmatprep.subr.mxu0 0.0
          %687 = vmatpush1.msra.mxu0 0.0
          %688 = vmatprep.subr.mxu0 0.0
          %689 = vmatpush1.msra.mxu0 0.0
          %690 = vmatprep.subr.mxu0 0.0
          %691 = vmatpush1.msra.mxu0 0.0
          %692 = vmatprep.subr.mxu0 0.0
          %693 = vmatpush1.msra.mxu0 0.0
          %694 = vmatprep.subr.mxu0 0.0
          %695 = vmatpush1.msra.mxu0 0.0
          %696 = vmatprep.subr.mxu0 0.0
          %697 = vmatpush1.msra.mxu0 0.0
          %698 = vmatprep.subr.mxu0 0.0
          %699 = vmatpush1.msra.mxu0 0.0
          %700 = vmatprep.mubr.f32.mxu0 0.0
          %701 = vmatmul.mubr.f32.gmra.mrb[0].mxu0 %v611
          %v702 = vpop.f32.mrb[0].mxu0
          %v703 = vadd.f32 %v634, %v702
          %v704 = vpop.f32.mrb[0].mxu0
          %705 = vmatprep.mubr.f32.mxu0 0.0
          %706 = vmatmul.mubr.f32.gmra.mrb[0].mxu0 %v612
          %v707 = vpop.f32.mrb[0].mxu0
          %v708 = vadd.f32 %v634, %v707
          %v709 = vpop.f32.mrb[0].mxu0
          %710 = vdwg.mxu0
          %v711 = vmax.f32 %v703, 0.0
          %v712 = vmax.f32 %v708, 0.0
          %713 = vst [vmem:[%s385] sm:$0xff] %v711
          %714 = vst [vmem:[%s385 + $0x8] sm:$0xff] %v712
        $region72: #{tpu_custom_call.1} parent=47 // pred_fallthru
          _
        %s715 = sand.u32 %s207, 1
        %s716 = scalar_lea.sflag [#allocation5], %s715
        %s717 = sand.u32 %s207, 1
        %s718 = smul.addr %s717, 16
        %s719 = scalar_lea.vmem [#allocation10], %s718
        // Predicated region
        $region73: #{tpu_custom_call.1} parent=47 // pred_check
          %p720 = pneg %p217
        $region74: #{tpu_custom_call.1} parent=47 // pred_check_branch
          %722 = sbr.rel (%p720) target = $region76
        $region75: #{tpu_custom_call.1} parent=47 // pred_region
          %s723 = smul.u32 2, %s29
          %s725 = ssub.s32 256, 256
          %726 = vsyncadd %s716, %s725
          %s727 = smul.addr %s723, 128
          %s728 = scalar_lea.hbm %s7, %s727
          %s729 = sshll.u32 %s719, 4
          %s730 = int_to_ptr.vmem [resolvable:$true] %s729
          %735 = dma.vmem_to_hbm [thread:$0]  %s730, 256, %s728, %s716, 128, 128, 8
        $region76: #{tpu_custom_call.1} parent=47 // pred_fallthru
          _
      $region48: #{tpu_custom_call.1} parent=5 // pred_fallthru
        _
      %p736 = scmp.le.s32.totalorder 2, %s20
      // Predicated region
      $region77: #{tpu_custom_call.1} parent=5 // pred_check
        %p737 = pneg %p736
      $region78: #{tpu_custom_call.1} parent=5 // pred_check_branch
        %739 = sbr.rel (%p737) target = $region80
      $region79: #{tpu_custom_call.1} parent=5 // pred_region
        %s740 = ssub.s32 %s20, 2
        // Predicated region
        $region81: #{tpu_custom_call.1} parent=79 // pred_check
          %p741 = pneg %p223
        $region82: #{tpu_custom_call.1} parent=79 // pred_check_branch
          %743 = sbr.rel (%p741) target = $region84
        $region83: #{tpu_custom_call.1} parent=79 // pred_region
          %s744 = sand.u32 %s208, 1
          %s745 = scalar_lea.sflag [#allocation5], %s744
          %s746 = sand.u32 %s208, 1
          %s747 = smul.addr %s746, 16
          %s748 = scalar_lea.vmem [#allocation10], %s747
          %749 = dma.done %s745, 256
        $region84: #{tpu_custom_call.1} parent=79 // pred_fallthru
          _
      $region80: #{tpu_custom_call.1} parent=5 // pred_fallthru
        _
    $region6: #{tpu_custom_call.1} parent=1 // loop_footer
      %s24 = sadd.s32 1, %s20
    $region7: #{tpu_custom_call.1} parent=1 // loop_footer_branch
      %19 = sbr.rel target = $region3
    $region8: #{tpu_custom_call.1} parent=1 // loop_exit
      _
    %750 = vsyncpa [#allocation4], 1
    %s751 = scalar_lea.sflag [#allocation4], 1
    %752 = vsyncpa %s751, 1
    %753 = vsyncpa [#allocation7], 1
    %754 = vsyncpa [#allocation5], 1
    %s755 = scalar_lea.sflag [#allocation5], 1
    %756 = vsyncpa %s755, 1

</llo_original>
